<compile_context>
chip_gen: v6e
topology: v6e:2x2x1
jax: 0.10.0
libtpu: 0.0.40
codegen_flags: <defaults>
</compile_context>

<pallas_src>
import jax
import jax.numpy as jnp
from jax.experimental import pallas as pl
from jax.experimental.pallas import tpu as pltpu

B, C, H, W = 2, 4, 16, 16
D = C * H * W          # 1024 flattened features
HID = 128              # hidden width of the synthetic discriminator


def _disc_loss_kernel(x_ref, w1_ref, b1_ref, w2_ref, b2_ref, out_ref):
    # x_ref:  (2B, D)   bf16  -- rows [0, B) = real batch, rows [B, 2B) = fake
    # w1_ref: (D, HID)  bf16
    # b1_ref: (1, HID)  f32
    # w2_ref: (1, HID)  f32   (lane-dense row form of the (HID, 1) weight)
    # b2_ref: (1,)      f32   SMEM scalar
    # out_ref:(4,)      f32   SMEM: [loss, D_real, D_fake, 0]

    # Single stacked MXU matmul for real + fake, f32 accumulation.
    h = jnp.dot(x_ref[...], w1_ref[...], preferred_element_type=jnp.float32)
    h = h + b1_ref[...]                              # (2B, HID) f32
    h = jnp.where(h > 0, h, 0.2 * h)                 # LeakyReLU(0.2), f32 VPU

    # Second layer (HID -> 1): broadcast-multiply + lane reduce (VPU + XLU),
    # not an N=1 MXU matmul.
    logits = jnp.sum(h * w2_ref[...], axis=-1, keepdims=True) + b2_ref[0]  # (2B, 1)

    # Targets: 1 for the real rows, 0 for the fake rows.
    row = jax.lax.broadcasted_iota(jnp.int32, logits.shape, 0)
    z = (row < B).astype(jnp.float32)                # (2B, 1)

    inv_b = 1.0 / float(B)

    # One shared EUP exp for both sigmoid and the stable BCE:
    #   e = exp(-|x|)
    #   sigmoid(x) = where(x >= 0, 1, e) / (1 + e)
    #   bce(x, z)  = max(x, 0) - x*z + log1p(e)
    e = jnp.exp(-jnp.abs(logits))
    denom = 1.0 + e
    sig = jnp.where(logits >= 0, 1.0, e) / denom

    # D_real / D_fake = sigmoid(logits).mean() over each half (masked sums).
    d_real = jnp.sum(sig * z) * inv_b
    d_fake = jnp.sum(sig * (1.0 - z)) * inv_b

    # loss_real + loss_fake = mean_real(bce) + mean_fake(bce) = sum(bce) / B.
    bce = jnp.maximum(logits, 0.0) - logits * z + jnp.log1p(e)
    loss = jnp.sum(bce) * inv_b

    out_ref[0] = loss
    out_ref[1] = d_real
    out_ref[2] = d_fake
    out_ref[3] = jnp.float32(0.0)


def _discriminator_loss_impl(real_images, fake_images, params):
    """Returns (loss, D_real, D_fake) — matches DiscriminatorLoss.forward."""
    w1, b1, w2, b2 = params
    xr = real_images.reshape(B, -1)
    # fake_images.detach() is a no-op here (no gradients are taken).
    xf = fake_images.reshape(B, -1)
    # Stack real + fake so the discriminator runs once; bf16 halves the DMA.
    x = jnp.concatenate([xr, xf], axis=0).astype(jnp.bfloat16)        # (2B, D)
    w1_bf16 = w1.astype(jnp.bfloat16)                                 # (D, HID)
    w2_row = w2.reshape(1, HID).astype(jnp.float32)                   # lane-dense
    b1_row = b1.reshape(1, HID).astype(jnp.float32)
    b2_vec = b2.reshape(1).astype(jnp.float32)

    vmem = pl.BlockSpec(memory_space=pltpu.MemorySpace.VMEM)
    smem = pl.BlockSpec(memory_space=pltpu.MemorySpace.SMEM)

    cost = pl.CostEstimate(
        flops=2 * (2 * B) * D * HID + 8 * (2 * B) * HID,
        transcendentals=2 * (2 * B),                       # exp, log1p
        bytes_accessed=(w1_bf16.size * 2 + x.size * 2
                        + b1_row.size * 4 + w2_row.size * 4
                        + b2_vec.size * 4 + 4 * 4),
    )

    out = pl.pallas_call(
        _disc_loss_kernel,
        out_shape=jax.ShapeDtypeStruct((4,), jnp.float32),
        in_specs=[vmem, vmem, vmem, vmem, smem],
        out_specs=smem,
        cost_estimate=cost,
    )(x, w1_bf16, b1_row, w2_row, b2_vec)
    return out[0], out[1], out[2]


discriminator_loss = jax.jit(_discriminator_loss_impl)


def _reference(real_images, fake_images, params):
    """Pure-JAX reference (same bf16-weight discriminator definition)."""
    w1, b1, w2, b2 = params

    def net_d(imgs):
        x = imgs.reshape(imgs.shape[0], -1).astype(jnp.bfloat16)
        h = jnp.dot(x, w1.astype(jnp.bfloat16),
                    preferred_element_type=jnp.float32) + b1
        h = jnp.where(h > 0, h, 0.2 * h)
        return h @ w2 + b2[0]                              # (B, 1) f32

    lr = net_d(real_images)
    lf = net_d(fake_images)
    d_real = jnp.mean(jax.nn.sigmoid(lr))
    d_fake = jnp.mean(jax.nn.sigmoid(lf))
    bce = lambda x, z: jnp.maximum(x, 0.0) - x * z + jnp.log1p(jnp.exp(-jnp.abs(x)))
    loss = jnp.mean(bce(lr, 1.0)) + jnp.mean(bce(lf, 0.0))
    return loss, d_real, d_fake


if __name__ == "__main__":
    key = jax.random.PRNGKey(0)
    k_real, k_fake, k_w1, k_w2 = jax.random.split(key, 4)

    real_images = jax.random.normal(k_real, (B, C, H, W), dtype=jnp.float32)
    fake_images = jax.random.normal(k_fake, (B, C, H, W), dtype=jnp.float32)

    # Deterministic synthetic discriminator parameters.
    w1 = jax.random.normal(k_w1, (D, HID), dtype=jnp.float32) * 0.02
    b1 = jnp.zeros((HID,), dtype=jnp.float32)
    w2 = jax.random.normal(k_w2, (HID, 1), dtype=jnp.float32) * 0.02
    b2 = jnp.zeros((1,), dtype=jnp.float32)
    params = (w1, b1, w2, b2)

    loss, d_real, d_fake = discriminator_loss(real_images, fake_images, params)
    jax.block_until_ready((loss, d_real, d_fake))

    ref_loss, ref_d_real, ref_d_fake = _reference(real_images, fake_images, params)
    assert jnp.allclose(loss, ref_loss, atol=1e-4, rtol=1e-4)
    assert jnp.allclose(d_real, ref_d_real, atol=1e-4, rtol=1e-4)
    assert jnp.allclose(d_fake, ref_d_fake, atol=1e-4, rtol=1e-4)

    print("KERNEL_OK")
</pallas_src>

<mosaic_0001>
module attributes {stable_mosaic.version = 11 : i64} {
  func.func @_disc_loss_kernel(%arg0: memref<4x1024xbf16, #tpu.memory_space<vmem>>, %arg1: memref<1024x128xbf16, #tpu.memory_space<vmem>>, %arg2: memref<1x128xf32, #tpu.memory_space<vmem>>, %arg3: memref<1x128xf32, #tpu.memory_space<vmem>>, %arg4: memref<1xf32, #tpu.memory_space<smem>>, %arg5: memref<4xf32, #tpu.memory_space<smem>>) attributes {dimension_semantics = [], scalar_prefetch = 0 : i64, scratch_operands = 0 : i64, tpu.core_type = #tpu.core_type<tc>} {
    %c0 = arith.constant 0 : index
    %c0_0 = arith.constant 0 : index
    %0 = vector.load %arg0[%c0, %c0_0] : memref<4x1024xbf16, #tpu.memory_space<vmem>>, vector<4x1024xbf16>
    %c0_1 = arith.constant 0 : index
    %c0_2 = arith.constant 0 : index
    %1 = vector.load %arg1[%c0_1, %c0_2] : memref<1024x128xbf16, #tpu.memory_space<vmem>>, vector<1024x128xbf16>
    %cst = arith.constant dense<0.000000e+00> : vector<4x128xf32>
    %2 = tpu.matmul %0, %1, %cst {dimension_numbers = #tpu.dot_dimension_numbers<[1], [0], [0], [1], [0, 0, 1, 1], [], []>} : vector<4x1024xbf16>, vector<1024x128xbf16>, vector<4x128xf32> -> vector<4x128xf32>
    %c0_3 = arith.constant 0 : index
    %c0_4 = arith.constant 0 : index
    %3 = vector.load %arg2[%c0_3, %c0_4] : memref<1x128xf32, #tpu.memory_space<vmem>>, vector<1x128xf32>
    %4 = vector.broadcast %3 : vector<1x128xf32> to vector<4x128xf32>
    %5 = arith.addf %2, %4 : vector<4x128xf32>
    %cst_5 = arith.constant 0.000000e+00 : f32
    %6 = vector.broadcast %cst_5 : f32 to vector<4x128xf32>
    %7 = arith.cmpf ogt, %5, %6 : vector<4x128xf32>
    %cst_6 = arith.constant 2.000000e-01 : f32
    %8 = vector.broadcast %cst_6 : f32 to vector<4x128xf32>
    %9 = arith.mulf %8, %5 : vector<4x128xf32>
    %10 = arith.select %7, %5, %9 : vector<4x128xi1>, vector<4x128xf32>
    %c0_7 = arith.constant 0 : index
    %c0_8 = arith.constant 0 : index
    %11 = vector.load %arg3[%c0_7, %c0_8] : memref<1x128xf32, #tpu.memory_space<vmem>>, vector<1x128xf32>
    %12 = vector.broadcast %11 : vector<1x128xf32> to vector<4x128xf32>
    %13 = arith.mulf %10, %12 : vector<4x128xf32>
    %cst_9 = arith.constant dense<0.000000e+00> : vector<4xf32>
    %14 = vector.multi_reduction <add>, %13, %cst_9 [1] : vector<4x128xf32> to vector<4xf32>
    %15 = vector.shape_cast %14 : vector<4xf32> to vector<4x1xf32>
    %c0_10 = arith.constant 0 : index
    %16 = memref.load %arg4[%c0_10] : memref<1xf32, #tpu.memory_space<smem>>
    %17 = vector.broadcast %16 : f32 to vector<4x1xf32>
    %18 = arith.addf %15, %17 : vector<4x1xf32>
    %19 = tpu.iota {dimensions = array<i32: 0>} : vector<4x1xi32>
    %c2_i32 = arith.constant 2 : i32
    %20 = vector.broadcast %c2_i32 : i32 to vector<4x1xi32>
    %21 = arith.cmpi slt, %19, %20 : vector<4x1xi32>
    %22 = arith.extui %21 : vector<4x1xi1> to vector<4x1xi32>
    %23 = arith.sitofp %22 : vector<4x1xi32> to vector<4x1xf32>
    %24 = math.absf %18 : vector<4x1xf32>
    %cst_11 = arith.constant 0.000000e+00 : f32
    %25 = vector.broadcast %cst_11 : f32 to vector<4x1xf32>
    %26 = arith.subf %25, %24 : vector<4x1xf32>
    %27 = math.exp %26 : vector<4x1xf32>
    %cst_12 = arith.constant 1.000000e+00 : f32
    %28 = vector.broadcast %cst_12 : f32 to vector<4x1xf32>
    %29 = arith.addf %28, %27 : vector<4x1xf32>
    %cst_13 = arith.constant 0.000000e+00 : f32
    %30 = vector.broadcast %cst_13 : f32 to vector<4x1xf32>
    %31 = arith.cmpf oge, %18, %30 : vector<4x1xf32>
    %cst_14 = arith.constant 1.000000e+00 : f32
    %32 = vector.broadcast %cst_14 : f32 to vector<4x1xf32>
    %33 = arith.select %31, %32, %27 : vector<4x1xi1>, vector<4x1xf32>
    %34 = arith.divf %33, %29 : vector<4x1xf32>
    %35 = arith.mulf %34, %23 : vector<4x1xf32>
    %36 = vector.shape_cast %35 : vector<4x1xf32> to vector<1x4x1xf32>
    %cst_15 = arith.constant dense<0.000000e+00> : vector<1xf32>
    %37 = vector.multi_reduction <add>, %36, %cst_15 [1, 2] : vector<1x4x1xf32> to vector<1xf32>
    %38 = vector.shape_cast %37 : vector<1xf32> to vector<1x1x1xf32>
    %39 = vector.extract %38[0, 0, 0] : f32 from vector<1x1x1xf32>
    %cst_16 = arith.constant 5.000000e-01 : f32
    %40 = arith.mulf %39, %cst_16 : f32
    %cst_17 = arith.constant 1.000000e+00 : f32
    %41 = vector.broadcast %cst_17 : f32 to vector<4x1xf32>
    %42 = arith.subf %41, %23 : vector<4x1xf32>
    %43 = arith.mulf %34, %42 : vector<4x1xf32>
    %44 = vector.shape_cast %43 : vector<4x1xf32> to vector<1x4x1xf32>
    %cst_18 = arith.constant dense<0.000000e+00> : vector<1xf32>
    %45 = vector.multi_reduction <add>, %44, %cst_18 [1, 2] : vector<1x4x1xf32> to vector<1xf32>
    %46 = vector.shape_cast %45 : vector<1xf32> to vector<1x1x1xf32>
    %47 = vector.extract %46[0, 0, 0] : f32 from vector<1x1x1xf32>
    %cst_19 = arith.constant 5.000000e-01 : f32
    %48 = arith.mulf %47, %cst_19 : f32
    %cst_20 = arith.constant 0.000000e+00 : f32
    %49 = vector.broadcast %cst_20 : f32 to vector<4x1xf32>
    %50 = arith.maximumf %18, %49 : vector<4x1xf32>
    %51 = arith.mulf %18, %23 : vector<4x1xf32>
    %52 = arith.subf %50, %51 : vector<4x1xf32>
    %53 = math.log1p %27 : vector<4x1xf32>
    %54 = arith.addf %52, %53 : vector<4x1xf32>
    %55 = vector.shape_cast %54 : vector<4x1xf32> to vector<1x4x1xf32>
    %cst_21 = arith.constant dense<0.000000e+00> : vector<1xf32>
    %56 = vector.multi_reduction <add>, %55, %cst_21 [1, 2] : vector<1x4x1xf32> to vector<1xf32>
    %57 = vector.shape_cast %56 : vector<1xf32> to vector<1x1x1xf32>
    %58 = vector.extract %57[0, 0, 0] : f32 from vector<1x1x1xf32>
    %cst_22 = arith.constant 5.000000e-01 : f32
    %59 = arith.mulf %58, %cst_22 : f32
    %c0_23 = arith.constant 0 : index
    %60 = memref.load %arg5[%c0_23] : memref<4xf32, #tpu.memory_space<smem>>
    memref.store %59, %arg5[%c0_23] : memref<4xf32, #tpu.memory_space<smem>>
    %c1 = arith.constant 1 : index
    %61 = memref.load %arg5[%c1] : memref<4xf32, #tpu.memory_space<smem>>
    memref.store %40, %arg5[%c1] : memref<4xf32, #tpu.memory_space<smem>>
    %c2 = arith.constant 2 : index
    %62 = memref.load %arg5[%c2] : memref<4xf32, #tpu.memory_space<smem>>
    memref.store %48, %arg5[%c2] : memref<4xf32, #tpu.memory_space<smem>>
    %cst_24 = arith.constant 0.000000e+00 : f32
    %c3 = arith.constant 3 : index
    %63 = memref.load %arg5[%c3] : memref<4xf32, #tpu.memory_space<smem>>
    memref.store %cst_24, %arg5[%c3] : memref<4xf32, #tpu.memory_space<smem>>
    return
  }
}

</mosaic_0001>

<llo_original>
// kernel: _discriminator_loss_impl.1
$region0: #{_discriminator_loss_impl.1}
  #allocation0 [shape = 'u32[]', space=smem, size = 0x4, offset = 0x4, fixed_abs, tag = 'smem constant byte address 0x4 - core index']
  #allocation1 [shape = 'u32[144,128]{1,0:T(1,128)}', space=vmem, size = 0x12000, scoped, tag = 'internal scratch']
  #allocation2 [shape = 'f32[1]{0:T(128)S(6)}', space=smem, size = 0x200, scoped, tag = 'scoped memory for _discriminator_loss_impl.1']
  %s0 = inlined_call_operand.vmem [shape: bf16[4,1024], index: 0, kind: input, shape index: {}]
  %s1 = inlined_call_operand.vmem [shape: bf16[1024,128], index: 1, kind: input, shape index: {}]
  %s2 = inlined_call_operand.vmem [shape: f32[1,128], index: 2, kind: input, shape index: {}]
  %s3 = inlined_call_operand.vmem [shape: f32[1,128], index: 3, kind: input, shape index: {}]
  %s4 = inlined_call_operand.<no memory space> [shape: f32[1], index: 4, kind: input, shape index: {}]
  %s5 = inlined_call_operand.vmem [shape: f32[4], index: 5, kind: output, shape index: {}]
  %s6 = sld [smem:[#allocation0]]
  $region30: #{_discriminator_loss_impl.1} parent=0
    _
  %s8 = ssub.s32 1, %s6
  %s9 = scalar_select 0, %s8, %s6
  %10 = sst [smem:[#allocation2]] %s4
  $region1: #{_discriminator_loss_impl.1} parent=0
    #allocation3 [shape = 'u8[512]{0}', space=smem, size = 0x200, scoped, tag = 'output window, operand 0, single buffered']
    #allocation4 [shape = 's32[1]{0}', space=sflag, size = 0x4, scoped, tag = 'scoped memory for _discriminator_loss_impl.1']
    %11 = vsyncpa [#allocation4], 0
    // Predicated region
    $region2: #{_discriminator_loss_impl.1} parent=1 // pred_check
      _
    $region3: #{_discriminator_loss_impl.1} parent=1 // pred_check_branch
      %13 = sbr.rel (0) target = $region5
    $region4: #{_discriminator_loss_impl.1} parent=1 // pred_region
      _
    $region5: #{_discriminator_loss_impl.1} parent=1 // pred_fallthru
      _
    // Predicated region
    $region6: #{_discriminator_loss_impl.1} parent=1 // pred_check
      _
    $region7: #{_discriminator_loss_impl.1} parent=1 // pred_check_branch
      %15 = sbr.rel (0) target = $region9
    $region8: #{_discriminator_loss_impl.1} parent=1 // pred_region
      _
    $region9: #{_discriminator_loss_impl.1} parent=1 // pred_fallthru
      _
    // Predicated region
    $region10: #{_discriminator_loss_impl.1} parent=1 // pred_check
      _
    $region11: #{_discriminator_loss_impl.1} parent=1 // pred_check_branch
      %17 = sbr.rel (0) target = $region13
    $region12: #{_discriminator_loss_impl.1} parent=1 // pred_region
      _
    $region13: #{_discriminator_loss_impl.1} parent=1 // pred_fallthru
      _
    // Predicated region
    $region14: #{_discriminator_loss_impl.1} parent=1 // pred_check
      _
    $region15: #{_discriminator_loss_impl.1} parent=1 // pred_check_branch
      %19 = sbr.rel (0) target = $region17
    $region16: #{_discriminator_loss_impl.1} parent=1 // pred_region
      _
    $region17: #{_discriminator_loss_impl.1} parent=1 // pred_fallthru
      _
    // Predicated region
    $region18: #{_discriminator_loss_impl.1} parent=1 // pred_check
      _
    $region19: #{_discriminator_loss_impl.1} parent=1 // pred_check_branch
      %21 = sbr.rel (0) target = $region21
    $region20: #{_discriminator_loss_impl.1} parent=1 // pred_region
      _
    $region21: #{_discriminator_loss_impl.1} parent=1 // pred_fallthru
      _
    %v23 = vld [vmem:[%s0] sm:$0xff]
    %v24 = vld [vmem:[%s0 + $0x8] sm:$0xff]
    %v25 = vld [vmem:[%s1] sm:$0xf]
    %v26 = vld [vmem:[%s1 + $0x4] sm:$0xf]
    %v27 = vld [vmem:[%s1 + $0x8] sm:$0xf]
    %v28 = vld [vmem:[%s1 + $0xc] sm:$0xf]
    %v29 = vld [vmem:[%s1 + $0x10] sm:$0xf]
    %v30 = vld [vmem:[%s1 + $0x14] sm:$0xf]
    %v31 = vld [vmem:[%s1 + $0x18] sm:$0xf]
    %v32 = vld [vmem:[%s1 + $0x1c] sm:$0xf]
    %v33 = vld [vmem:[%s1 + $0x20] sm:$0xf]
    %v34 = vld [vmem:[%s1 + $0x24] sm:$0xf]
    %v35 = vld [vmem:[%s1 + $0x28] sm:$0xf]
    %v36 = vld [vmem:[%s1 + $0x2c] sm:$0xf]
    %v37 = vld [vmem:[%s1 + $0x30] sm:$0xf]
    %v38 = vld [vmem:[%s1 + $0x34] sm:$0xf]
    %v39 = vld [vmem:[%s1 + $0x38] sm:$0xf]
    %v40 = vld [vmem:[%s1 + $0x3c] sm:$0xf]
    %v41 = vld [vmem:[%s1 + $0x40] sm:$0xf]
    %v42 = vld [vmem:[%s1 + $0x44] sm:$0xf]
    %v43 = vld [vmem:[%s1 + $0x48] sm:$0xf]
    %v44 = vld [vmem:[%s1 + $0x4c] sm:$0xf]
    %v45 = vld [vmem:[%s1 + $0x50] sm:$0xf]
    %v46 = vld [vmem:[%s1 + $0x54] sm:$0xf]
    %v47 = vld [vmem:[%s1 + $0x58] sm:$0xf]
    %v48 = vld [vmem:[%s1 + $0x5c] sm:$0xf]
    %v49 = vld [vmem:[%s1 + $0x60] sm:$0xf]
    %v50 = vld [vmem:[%s1 + $0x64] sm:$0xf]
    %v51 = vld [vmem:[%s1 + $0x68] sm:$0xf]
    %v52 = vld [vmem:[%s1 + $0x6c] sm:$0xf]
    %v53 = vld [vmem:[%s1 + $0x70] sm:$0xf]
    %v54 = vld [vmem:[%s1 + $0x74] sm:$0xf]
    %v55 = vld [vmem:[%s1 + $0x78] sm:$0xf]
    %v56 = vld [vmem:[%s1 + $0x7c] sm:$0xf]
    %v57 = vld [vmem:[%s1 + $0x80] sm:$0xf]
    %v58 = vld [vmem:[%s1 + $0x84] sm:$0xf]
    %v59 = vld [vmem:[%s1 + $0x88] sm:$0xf]
    %v60 = vld [vmem:[%s1 + $0x8c] sm:$0xf]
    %v61 = vld [vmem:[%s1 + $0x90] sm:$0xf]
    %v62 = vld [vmem:[%s1 + $0x94] sm:$0xf]
    %v63 = vld [vmem:[%s1 + $0x98] sm:$0xf]
    %v64 = vld [vmem:[%s1 + $0x9c] sm:$0xf]
    %v65 = vld [vmem:[%s1 + $0xa0] sm:$0xf]
    %v66 = vld [vmem:[%s1 + $0xa4] sm:$0xf]
    %v67 = vld [vmem:[%s1 + $0xa8] sm:$0xf]
    %v68 = vld [vmem:[%s1 + $0xac] sm:$0xf]
    %v69 = vld [vmem:[%s1 + $0xb0] sm:$0xf]
    %v70 = vld [vmem:[%s1 + $0xb4] sm:$0xf]
    %v71 = vld [vmem:[%s1 + $0xb8] sm:$0xf]
    %v72 = vld [vmem:[%s1 + $0xbc] sm:$0xf]
    %v73 = vld [vmem:[%s1 + $0xc0] sm:$0xf]
    %v74 = vld [vmem:[%s1 + $0xc4] sm:$0xf]
    %v75 = vld [vmem:[%s1 + $0xc8] sm:$0xf]
    %v76 = vld [vmem:[%s1 + $0xcc] sm:$0xf]
    %v77 = vld [vmem:[%s1 + $0xd0] sm:$0xf]
    %v78 = vld [vmem:[%s1 + $0xd4] sm:$0xf]
    %v79 = vld [vmem:[%s1 + $0xd8] sm:$0xf]
    %v80 = vld [vmem:[%s1 + $0xdc] sm:$0xf]
    %v81 = vld [vmem:[%s1 + $0xe0] sm:$0xf]
    %v82 = vld [vmem:[%s1 + $0xe4] sm:$0xf]
    %v83 = vld [vmem:[%s1 + $0xe8] sm:$0xf]
    %v84 = vld [vmem:[%s1 + $0xec] sm:$0xf]
    %v85 = vld [vmem:[%s1 + $0xf0] sm:$0xf]
    %v86 = vld [vmem:[%s1 + $0xf4] sm:$0xf]
    %v87 = vld [vmem:[%s1 + $0xf8] sm:$0xf]
    %v88 = vld [vmem:[%s1 + $0xfc] sm:$0xf]
    %v89 = vld [vmem:[%s1 + $0x100] sm:$0xf]
    %v90 = vld [vmem:[%s1 + $0x104] sm:$0xf]
    %v91 = vld [vmem:[%s1 + $0x108] sm:$0xf]
    %v92 = vld [vmem:[%s1 + $0x10c] sm:$0xf]
    %v93 = vld [vmem:[%s1 + $0x110] sm:$0xf]
    %v94 = vld [vmem:[%s1 + $0x114] sm:$0xf]
    %v95 = vld [vmem:[%s1 + $0x118] sm:$0xf]
    %v96 = vld [vmem:[%s1 + $0x11c] sm:$0xf]
    %v97 = vld [vmem:[%s1 + $0x120] sm:$0xf]
    %v98 = vld [vmem:[%s1 + $0x124] sm:$0xf]
    %v99 = vld [vmem:[%s1 + $0x128] sm:$0xf]
    %v100 = vld [vmem:[%s1 + $0x12c] sm:$0xf]
    %v101 = vld [vmem:[%s1 + $0x130] sm:$0xf]
    %v102 = vld [vmem:[%s1 + $0x134] sm:$0xf]
    %v103 = vld [vmem:[%s1 + $0x138] sm:$0xf]
    %v104 = vld [vmem:[%s1 + $0x13c] sm:$0xf]
    %v105 = vld [vmem:[%s1 + $0x140] sm:$0xf]
    %v106 = vld [vmem:[%s1 + $0x144] sm:$0xf]
    %v107 = vld [vmem:[%s1 + $0x148] sm:$0xf]
    %v108 = vld [vmem:[%s1 + $0x14c] sm:$0xf]
    %v109 = vld [vmem:[%s1 + $0x150] sm:$0xf]
    %v110 = vld [vmem:[%s1 + $0x154] sm:$0xf]
    %v111 = vld [vmem:[%s1 + $0x158] sm:$0xf]
    %v112 = vld [vmem:[%s1 + $0x15c] sm:$0xf]
    %v113 = vld [vmem:[%s1 + $0x160] sm:$0xf]
    %v114 = vld [vmem:[%s1 + $0x164] sm:$0xf]
    %v115 = vld [vmem:[%s1 + $0x168] sm:$0xf]
    %v116 = vld [vmem:[%s1 + $0x16c] sm:$0xf]
    %v117 = vld [vmem:[%s1 + $0x170] sm:$0xf]
    %v118 = vld [vmem:[%s1 + $0x174] sm:$0xf]
    %v119 = vld [vmem:[%s1 + $0x178] sm:$0xf]
    %v120 = vld [vmem:[%s1 + $0x17c] sm:$0xf]
    %v121 = vld [vmem:[%s1 + $0x180] sm:$0xf]
    %v122 = vld [vmem:[%s1 + $0x184] sm:$0xf]
    %v123 = vld [vmem:[%s1 + $0x188] sm:$0xf]
    %v124 = vld [vmem:[%s1 + $0x18c] sm:$0xf]
    %v125 = vld [vmem:[%s1 + $0x190] sm:$0xf]
    %v126 = vld [vmem:[%s1 + $0x194] sm:$0xf]
    %v127 = vld [vmem:[%s1 + $0x198] sm:$0xf]
    %v128 = vld [vmem:[%s1 + $0x19c] sm:$0xf]
    %v129 = vld [vmem:[%s1 + $0x1a0] sm:$0xf]
    %v130 = vld [vmem:[%s1 + $0x1a4] sm:$0xf]
    %v131 = vld [vmem:[%s1 + $0x1a8] sm:$0xf]
    %v132 = vld [vmem:[%s1 + $0x1ac] sm:$0xf]
    %v133 = vld [vmem:[%s1 + $0x1b0] sm:$0xf]
    %v134 = vld [vmem:[%s1 + $0x1b4] sm:$0xf]
    %v135 = vld [vmem:[%s1 + $0x1b8] sm:$0xf]
    %v136 = vld [vmem:[%s1 + $0x1bc] sm:$0xf]
    %v137 = vld [vmem:[%s1 + $0x1c0] sm:$0xf]
    %v138 = vld [vmem:[%s1 + $0x1c4] sm:$0xf]
    %v139 = vld [vmem:[%s1 + $0x1c8] sm:$0xf]
    %v140 = vld [vmem:[%s1 + $0x1cc] sm:$0xf]
    %v141 = vld [vmem:[%s1 + $0x1d0] sm:$0xf]
    %v142 = vld [vmem:[%s1 + $0x1d4] sm:$0xf]
    %v143 = vld [vmem:[%s1 + $0x1d8] sm:$0xf]
    %v144 = vld [vmem:[%s1 + $0x1dc] sm:$0xf]
    %v145 = vld [vmem:[%s1 + $0x1e0] sm:$0xf]
    %v146 = vld [vmem:[%s1 + $0x1e4] sm:$0xf]
    %v147 = vld [vmem:[%s1 + $0x1e8] sm:$0xf]
    %v148 = vld [vmem:[%s1 + $0x1ec] sm:$0xf]
    %v149 = vld [vmem:[%s1 + $0x1f0] sm:$0xf]
    %v150 = vld [vmem:[%s1 + $0x1f4] sm:$0xf]
    %v151 = vld [vmem:[%s1 + $0x1f8] sm:$0xf]
    %v152 = vld [vmem:[%s1 + $0x1fc] sm:$0xf]
    %v153 = vld [vmem:[%s2] sm:$0x1]
    %v155 = vlaneseq
    %v156 = vshrl.u32 %v155, 7
    %v157 = vsub.s32 0, %v156
    %v158 = vrot.slane %v153, %v157
    %v162 = vcombine.high %v23, %v23
    %v164 = vunpack.c.l.s4 1983009808
    %v165 = vunpack.c.0.s8 %v164
    %v166 = vlaneseq
    %v167 = vshrl.u32 %v166, 7
    %v168 = vsub.s32 %v165, %v167
    %v169 = vrot.slane %v23, %v168
    %v171 = vunpack.c.l.s4 1983009808
    %v172 = vunpack.c.0.s8 %v171
    %v173 = vlaneseq
    %v174 = vshrl.u32 %v173, 7
    %v175 = vsub.s32 %v172, %v174
    %v176 = vrot.slane %v162, %v175
    %v177 = vcombine.high %v169, %v169
    %v178 = vcombine.high %v176, %v176
    %v179 = vcombine.high %v24, %v24
    %v181 = vunpack.c.l.s4 1983009808
    %v182 = vunpack.c.0.s8 %v181
    %v183 = vlaneseq
    %v184 = vshrl.u32 %v183, 7
    %v185 = vsub.s32 %v182, %v184
    %v186 = vrot.slane %v24, %v185
    %v188 = vunpack.c.l.s4 1983009808
    %v189 = vunpack.c.0.s8 %v188
    %v190 = vlaneseq
    %v191 = vshrl.u32 %v190, 7
    %v192 = vsub.s32 %v189, %v191
    %v193 = vrot.slane %v179, %v192
    %v194 = vcombine.high %v186, %v186
    %v195 = vcombine.high %v193, %v193
    %v332 = vunpack.c.l.b16 %v25
    %v333 = vunpack.c.l.b16 %v26
    %v334 = vunpack.c.l.b16 %v27
    %v335 = vunpack.c.l.b16 %v28
    %v336 = vunpack.c.l.b16 %v29
    %v337 = vunpack.c.l.b16 %v30
    %v338 = vunpack.c.l.b16 %v31
    %v339 = vunpack.c.l.b16 %v32
    %v340 = vunpack.c.l.b16 %v33
    %v341 = vunpack.c.l.b16 %v34
    %v342 = vunpack.c.l.b16 %v35
    %v343 = vunpack.c.l.b16 %v36
    %v344 = vunpack.c.l.b16 %v37
    %v345 = vunpack.c.l.b16 %v38
    %v346 = vunpack.c.l.b16 %v39
    %v347 = vunpack.c.l.b16 %v40
    %v348 = vunpack.c.l.b16 %v41
    %v349 = vunpack.c.l.b16 %v42
    %v350 = vunpack.c.l.b16 %v43
    %v351 = vunpack.c.l.b16 %v44
    %v352 = vunpack.c.l.b16 %v45
    %v353 = vunpack.c.l.b16 %v46
    %v354 = vunpack.c.l.b16 %v47
    %v355 = vunpack.c.l.b16 %v48
    %v356 = vunpack.c.l.b16 %v49
    %v357 = vunpack.c.l.b16 %v50
    %v358 = vunpack.c.l.b16 %v51
    %v359 = vunpack.c.l.b16 %v52
    %v360 = vunpack.c.l.b16 %v53
    %v361 = vunpack.c.l.b16 %v54
    %v362 = vunpack.c.l.b16 %v55
    %v363 = vunpack.c.l.b16 %v56
    %v364 = vunpack.c.l.b16 %v57
    %v365 = vunpack.c.l.b16 %v58
    %v366 = vunpack.c.l.b16 %v59
    %v367 = vunpack.c.l.b16 %v60
    %v368 = vunpack.c.l.b16 %v61
    %v369 = vunpack.c.l.b16 %v62
    %v370 = vunpack.c.l.b16 %v63
    %v371 = vunpack.c.l.b16 %v64
    %v372 = vunpack.c.l.b16 %v65
    %v373 = vunpack.c.l.b16 %v66
    %v374 = vunpack.c.l.b16 %v67
    %v375 = vunpack.c.l.b16 %v68
    %v376 = vunpack.c.l.b16 %v69
    %v377 = vunpack.c.l.b16 %v70
    %v378 = vunpack.c.l.b16 %v71
    %v379 = vunpack.c.l.b16 %v72
    %v380 = vunpack.c.l.b16 %v73
    %v381 = vunpack.c.l.b16 %v74
    %v382 = vunpack.c.l.b16 %v75
    %v383 = vunpack.c.l.b16 %v76
    %v384 = vunpack.c.l.b16 %v77
    %v385 = vunpack.c.l.b16 %v78
    %v386 = vunpack.c.l.b16 %v79
    %v387 = vunpack.c.l.b16 %v80
    %v388 = vunpack.c.l.b16 %v81
    %v389 = vunpack.c.l.b16 %v82
    %v390 = vunpack.c.l.b16 %v83
    %v391 = vunpack.c.l.b16 %v84
    %v392 = vunpack.c.l.b16 %v85
    %v393 = vunpack.c.l.b16 %v86
    %v394 = vunpack.c.l.b16 %v87
    %v395 = vunpack.c.l.b16 %v88
    %v396 = vunpack.c.l.b16 %v89
    %v397 = vunpack.c.l.b16 %v90
    %v398 = vunpack.c.l.b16 %v91
    %v399 = vunpack.c.l.b16 %v92
    %v400 = vunpack.c.l.b16 %v93
    %v401 = vunpack.c.l.b16 %v94
    %v402 = vunpack.c.l.b16 %v95
    %v403 = vunpack.c.l.b16 %v96
    %v404 = vunpack.c.l.b16 %v97
    %v405 = vunpack.c.l.b16 %v98
    %v406 = vunpack.c.l.b16 %v99
    %v407 = vunpack.c.l.b16 %v100
    %v408 = vunpack.c.l.b16 %v101
    %v409 = vunpack.c.l.b16 %v102
    %v410 = vunpack.c.l.b16 %v103
    %v411 = vunpack.c.l.b16 %v104
    %v412 = vunpack.c.l.b16 %v105
    %v413 = vunpack.c.l.b16 %v106
    %v414 = vunpack.c.l.b16 %v107
    %v415 = vunpack.c.l.b16 %v108
    %v416 = vunpack.c.l.b16 %v109
    %v417 = vunpack.c.l.b16 %v110
    %v418 = vunpack.c.l.b16 %v111
    %v419 = vunpack.c.l.b16 %v112
    %v420 = vunpack.c.l.b16 %v113
    %v421 = vunpack.c.l.b16 %v114
    %v422 = vunpack.c.l.b16 %v115
    %v423 = vunpack.c.l.b16 %v116
    %v424 = vunpack.c.l.b16 %v117
    %v425 = vunpack.c.l.b16 %v118
    %v426 = vunpack.c.l.b16 %v119
    %v427 = vunpack.c.l.b16 %v120
    %v428 = vunpack.c.l.b16 %v121
    %v429 = vunpack.c.l.b16 %v122
    %v430 = vunpack.c.l.b16 %v123
    %v431 = vunpack.c.l.b16 %v124
    %v432 = vunpack.c.l.b16 %v125
    %v433 = vunpack.c.l.b16 %v126
    %v434 = vunpack.c.l.b16 %v127
    %v435 = vunpack.c.l.b16 %v128
    %v436 = vunpack.c.l.b16 %v129
    %v437 = vunpack.c.l.b16 %v130
    %v438 = vunpack.c.l.b16 %v131
    %v439 = vunpack.c.l.b16 %v132
    %v440 = vunpack.c.l.b16 %v133
    %v441 = vunpack.c.l.b16 %v134
    %v442 = vunpack.c.l.b16 %v135
    %v443 = vunpack.c.l.b16 %v136
    %v444 = vunpack.c.l.b16 %v137
    %v445 = vunpack.c.l.b16 %v138
    %v446 = vunpack.c.l.b16 %v139
    %v447 = vunpack.c.l.b16 %v140
    %v448 = vunpack.c.l.b16 %v141
    %v449 = vunpack.c.l.b16 %v142
    %v450 = vunpack.c.l.b16 %v143
    %v451 = vunpack.c.l.b16 %v144
    %v452 = vunpack.c.l.b16 %v145
    %v453 = vunpack.c.l.b16 %v146
    %v454 = vunpack.c.l.b16 %v147
    %v455 = vunpack.c.l.b16 %v148
    %v456 = vunpack.c.l.b16 %v149
    %v457 = vunpack.c.l.b16 %v150
    %v458 = vunpack.c.l.b16 %v151
    %v459 = vunpack.c.l.b16 %v152
    %v460 = vpack.c.b16 %v333, %v332
    %v461 = vpack.c.b16 %v335, %v334
    %v462 = vpack.c.b16 %v337, %v336
    %v463 = vpack.c.b16 %v339, %v338
    %v464 = vpack.c.b16 %v341, %v340
    %v465 = vpack.c.b16 %v343, %v342
    %v466 = vpack.c.b16 %v345, %v344
    %v467 = vpack.c.b16 %v347, %v346
    %v468 = vpack.c.b16 %v349, %v348
    %v469 = vpack.c.b16 %v351, %v350
    %v470 = vpack.c.b16 %v353, %v352
    %v471 = vpack.c.b16 %v355, %v354
    %v472 = vpack.c.b16 %v357, %v356
    %v473 = vpack.c.b16 %v359, %v358
    %v474 = vpack.c.b16 %v361, %v360
    %v475 = vpack.c.b16 %v363, %v362
    %v476 = vpack.c.b16 %v365, %v364
    %v477 = vpack.c.b16 %v367, %v366
    %v478 = vpack.c.b16 %v369, %v368
    %v479 = vpack.c.b16 %v371, %v370
    %v480 = vpack.c.b16 %v373, %v372
    %v481 = vpack.c.b16 %v375, %v374
    %v482 = vpack.c.b16 %v377, %v376
    %v483 = vpack.c.b16 %v379, %v378
    %v484 = vpack.c.b16 %v381, %v380
    %v485 = vpack.c.b16 %v383, %v382
    %v486 = vpack.c.b16 %v385, %v384
    %v487 = vpack.c.b16 %v387, %v386
    %v488 = vpack.c.b16 %v389, %v388
    %v489 = vpack.c.b16 %v391, %v390
    %v490 = vpack.c.b16 %v393, %v392
    %v491 = vpack.c.b16 %v395, %v394
    %v492 = vpack.c.b16 %v397, %v396
    %v493 = vpack.c.b16 %v399, %v398
    %v494 = vpack.c.b16 %v401, %v400
    %v495 = vpack.c.b16 %v403, %v402
    %v496 = vpack.c.b16 %v405, %v404
    %v497 = vpack.c.b16 %v407, %v406
    %v498 = vpack.c.b16 %v409, %v408
    %v499 = vpack.c.b16 %v411, %v410
    %v500 = vpack.c.b16 %v413, %v412
    %v501 = vpack.c.b16 %v415, %v414
    %v502 = vpack.c.b16 %v417, %v416
    %v503 = vpack.c.b16 %v419, %v418
    %v504 = vpack.c.b16 %v421, %v420
    %v505 = vpack.c.b16 %v423, %v422
    %v506 = vpack.c.b16 %v425, %v424
    %v507 = vpack.c.b16 %v427, %v426
    %v508 = vpack.c.b16 %v429, %v428
    %v509 = vpack.c.b16 %v431, %v430
    %v510 = vpack.c.b16 %v433, %v432
    %v511 = vpack.c.b16 %v435, %v434
    %v512 = vpack.c.b16 %v437, %v436
    %v513 = vpack.c.b16 %v439, %v438
    %v514 = vpack.c.b16 %v441, %v440
    %v515 = vpack.c.b16 %v443, %v442
    %v516 = vpack.c.b16 %v445, %v444
    %v517 = vpack.c.b16 %v447, %v446
    %v518 = vpack.c.b16 %v449, %v448
    %v519 = vpack.c.b16 %v451, %v450
    %v520 = vpack.c.b16 %v453, %v452
    %v521 = vpack.c.b16 %v455, %v454
    %v522 = vpack.c.b16 %v457, %v456
    %v523 = vpack.c.b16 %v459, %v458
    %588 = vmatprep.subr.bf16.mxu0 0
    %589 = vmatpush1.bf16.msra.mxu0 %v467
    %590 = vmatprep.subr.bf16.mxu0 0
    %591 = vmatpush1.bf16.msra.mxu0 %v466
    %592 = vmatprep.subr.bf16.mxu0 0
    %593 = vmatpush1.bf16.msra.mxu0 %v465
    %594 = vmatprep.subr.bf16.mxu0 0
    %595 = vmatpush1.bf16.msra.mxu0 %v464
    %596 = vmatprep.subr.bf16.mxu0 0
    %597 = vmatpush1.bf16.msra.mxu0 %v463
    %598 = vmatprep.subr.bf16.mxu0 0
    %599 = vmatpush1.bf16.msra.mxu0 %v462
    %600 = vmatprep.subr.bf16.mxu0 0
    %601 = vmatpush1.bf16.msra.mxu0 %v461
    %602 = vmatprep.subr.bf16.mxu0 0
    %603 = vmatpush1.bf16.msra.mxu0 %v460
    %604 = vmatprep.subr.bf16.mxu0 0
    %605 = vmatpush2.bf16.msra.mxu0 %v475
    %606 = vmatprep.subr.bf16.mxu0 0
    %607 = vmatpush2.bf16.msra.mxu0 %v474
    %608 = vmatprep.subr.bf16.mxu0 0
    %609 = vmatpush2.bf16.msra.mxu0 %v473
    %610 = vmatprep.subr.bf16.mxu0 0
    %611 = vmatpush2.bf16.msra.mxu0 %v472
    %612 = vmatprep.subr.bf16.mxu0 0
    %613 = vmatpush2.bf16.msra.mxu0 %v471
    %614 = vmatprep.subr.bf16.mxu0 0
    %615 = vmatpush2.bf16.msra.mxu0 %v470
    %616 = vmatprep.subr.bf16.mxu0 0
    %617 = vmatpush2.bf16.msra.mxu0 %v469
    %618 = vmatprep.subr.bf16.mxu0 0
    %619 = vmatpush2.bf16.msra.mxu0 %v468
    %620 = vmatprep.mubr.bf16.mxu0 %v177
    %621 = vmatmul.mubr.bf16.gmra.mxu0 %v169
    %v622 = vpop.f32.mrf.mxu0
    %v623 = vadd.f32 %v158, %v622
    %v624 = vpop.f32.mrf.mxu0
    %v625 = vpop.f32.mrf.mxu0
    %v626 = vpop.f32.mrf.mxu0
    %627 = vdwg.mxu0
    %628 = vmatprep.subr.bf16.mxu0 0
    %629 = vmatpush1.bf16.msra.mxu0 %v483
    %630 = vmatprep.subr.bf16.mxu0 0
    %631 = vmatpush1.bf16.msra.mxu0 %v482
    %632 = vmatprep.subr.bf16.mxu0 0
    %633 = vmatpush1.bf16.msra.mxu0 %v481
    %634 = vmatprep.subr.bf16.mxu0 0
    %635 = vmatpush1.bf16.msra.mxu0 %v480
    %636 = vmatprep.subr.bf16.mxu0 0
    %637 = vmatpush1.bf16.msra.mxu0 %v479
    %638 = vmatprep.subr.bf16.mxu0 0
    %639 = vmatpush1.bf16.msra.mxu0 %v478
    %640 = vmatprep.subr.bf16.mxu0 0
    %641 = vmatpush1.bf16.msra.mxu0 %v477
    %642 = vmatprep.subr.bf16.mxu0 0
    %643 = vmatpush1.bf16.msra.mxu0 %v476
    %644 = vmatprep.subr.bf16.mxu0 0
    %645 = vmatpush2.bf16.msra.mxu0 %v491
    %646 = vmatprep.subr.bf16.mxu0 0
    %647 = vmatpush2.bf16.msra.mxu0 %v490
    %648 = vmatprep.subr.bf16.mxu0 0
    %649 = vmatpush2.bf16.msra.mxu0 %v489
    %650 = vmatprep.subr.bf16.mxu0 0
    %651 = vmatpush2.bf16.msra.mxu0 %v488
    %652 = vmatprep.subr.bf16.mxu0 0
    %653 = vmatpush2.bf16.msra.mxu0 %v487
    %654 = vmatprep.subr.bf16.mxu0 0
    %655 = vmatpush2.bf16.msra.mxu0 %v486
    %656 = vmatprep.subr.bf16.mxu0 0
    %657 = vmatpush2.bf16.msra.mxu0 %v485
    %658 = vmatprep.subr.bf16.mxu0 0
    %659 = vmatpush2.bf16.msra.mxu0 %v484
    %660 = vmatprep.mubr.bf16.mxu0 %v178
    %661 = vmatmul.mubr.bf16.gmra.mxu0 %v176
    %v662 = vpop.f32.mrf.mxu0
    %v663 = vadd.f32 %v623, %v662
    %v664 = vpop.f32.mrf.mxu0
    %v665 = vpop.f32.mrf.mxu0
    %v666 = vpop.f32.mrf.mxu0
    %667 = vdwg.mxu0
    %668 = vmatprep.subr.bf16.mxu0 0
    %669 = vmatpush1.bf16.msra.mxu0 %v499
    %670 = vmatprep.subr.bf16.mxu0 0
    %671 = vmatpush1.bf16.msra.mxu0 %v498
    %672 = vmatprep.subr.bf16.mxu0 0
    %673 = vmatpush1.bf16.msra.mxu0 %v497
    %674 = vmatprep.subr.bf16.mxu0 0
    %675 = vmatpush1.bf16.msra.mxu0 %v496
    %676 = vmatprep.subr.bf16.mxu0 0
    %677 = vmatpush1.bf16.msra.mxu0 %v495
    %678 = vmatprep.subr.bf16.mxu0 0
    %679 = vmatpush1.bf16.msra.mxu0 %v494
    %680 = vmatprep.subr.bf16.mxu0 0
    %681 = vmatpush1.bf16.msra.mxu0 %v493
    %682 = vmatprep.subr.bf16.mxu0 0
    %683 = vmatpush1.bf16.msra.mxu0 %v492
    %684 = vmatprep.subr.bf16.mxu0 0
    %685 = vmatpush2.bf16.msra.mxu0 %v507
    %686 = vmatprep.subr.bf16.mxu0 0
    %687 = vmatpush2.bf16.msra.mxu0 %v506
    %688 = vmatprep.subr.bf16.mxu0 0
    %689 = vmatpush2.bf16.msra.mxu0 %v505
    %690 = vmatprep.subr.bf16.mxu0 0
    %691 = vmatpush2.bf16.msra.mxu0 %v504
    %692 = vmatprep.subr.bf16.mxu0 0
    %693 = vmatpush2.bf16.msra.mxu0 %v503
    %694 = vmatprep.subr.bf16.mxu0 0
    %695 = vmatpush2.bf16.msra.mxu0 %v502
    %696 = vmatprep.subr.bf16.mxu0 0
    %697 = vmatpush2.bf16.msra.mxu0 %v501
    %698 = vmatprep.subr.bf16.mxu0 0
    %699 = vmatpush2.bf16.msra.mxu0 %v500
    %700 = vmatprep.mubr.bf16.mxu0 %v194
    %701 = vmatmul.mubr.bf16.gmra.mxu0 %v186
    %v702 = vpop.f32.mrf.mxu0
    %v703 = vadd.f32 %v663, %v702
    %v704 = vpop.f32.mrf.mxu0
    %v705 = vpop.f32.mrf.mxu0
    %v706 = vpop.f32.mrf.mxu0
    %707 = vdwg.mxu0
    %708 = vmatprep.subr.bf16.mxu0 0
    %709 = vmatpush1.bf16.msra.mxu0 %v515
    %710 = vmatprep.subr.bf16.mxu0 0
    %711 = vmatpush1.bf16.msra.mxu0 %v514
    %712 = vmatprep.subr.bf16.mxu0 0
    %713 = vmatpush1.bf16.msra.mxu0 %v513
    %714 = vmatprep.subr.bf16.mxu0 0
    %715 = vmatpush1.bf16.msra.mxu0 %v512
    %716 = vmatprep.subr.bf16.mxu0 0
    %717 = vmatpush1.bf16.msra.mxu0 %v511
    %718 = vmatprep.subr.bf16.mxu0 0
    %719 = vmatpush1.bf16.msra.mxu0 %v510
    %720 = vmatprep.subr.bf16.mxu0 0
    %721 = vmatpush1.bf16.msra.mxu0 %v509
    %722 = vmatprep.subr.bf16.mxu0 0
    %723 = vmatpush1.bf16.msra.mxu0 %v508
    %724 = vmatprep.subr.bf16.mxu0 0
    %725 = vmatpush2.bf16.msra.mxu0 %v523
    %726 = vmatprep.subr.bf16.mxu0 0
    %727 = vmatpush2.bf16.msra.mxu0 %v522
    %728 = vmatprep.subr.bf16.mxu0 0
    %729 = vmatpush2.bf16.msra.mxu0 %v521
    %730 = vmatprep.subr.bf16.mxu0 0
    %731 = vmatpush2.bf16.msra.mxu0 %v520
    %732 = vmatprep.subr.bf16.mxu0 0
    %733 = vmatpush2.bf16.msra.mxu0 %v519
    %734 = vmatprep.subr.bf16.mxu0 0
    %735 = vmatpush2.bf16.msra.mxu0 %v518
    %736 = vmatprep.subr.bf16.mxu0 0
    %737 = vmatpush2.bf16.msra.mxu0 %v517
    %738 = vmatprep.subr.bf16.mxu0 0
    %739 = vmatpush2.bf16.msra.mxu0 %v516
    %740 = vmatprep.mubr.bf16.mxu0 %v195
    %741 = vmatmul.mubr.bf16.gmra.mxu0 %v193
    %v742 = vpop.f32.mrf.mxu0
    %v743 = vadd.f32 %v703, %v742
    %v744 = vpop.f32.mrf.mxu0
    %v745 = vpop.f32.mrf.mxu0
    %v746 = vpop.f32.mrf.mxu0
    %747 = vdwg.mxu0
    %vm748 = vcmp.gt.f32.partialorder %v743, 0.0
    %v749 = vmul.f32 %v743, 0.2
    %v750 = vsel %vm748, %v743, %v749
    %v751 = vld [vmem:[%s3] sm:$0x1]
    %v753 = vlaneseq
    %v754 = vshrl.u32 %v753, 7
    %v755 = vsub.s32 0, %v754
    %v756 = vrot.slane %v751, %v755
    %v758 = vmul.f32 %v750, %v756
    %vm759 = vcmask 1043456
    %v760 = vsel %vm759, %v758, 0.0
    %761 = vadd.xlane.f32.xlu0 %v760
    %v762 = vpop.xlane.xlu0 %761
    %s763 = sld [smem:[#allocation2]]
    %v764 = vstv %s763
    %v765 = vadd.f32 %v762, %v764
    %v766 = vlaneseq
    %v767 = vshrl.u32 %v766, 7
    %vm768 = vcmp.lt.s32.totalorder %v767, 2
    %v769 = vsel %vm768, 1, 0
    %v770 = vcvt.s32.f32 %v769
    %v771 = vand.u32 2147483647, %v765
    %v772 = vsub.f32 0.0, %v771
    %v773 = vmul.f32 %v772, 1.442695
    %v774 = vpow.pop %v773
    %v775 = vadd.f32 %v774, 1.0
    %vm776 = vcmp.ge.f32.partialorder %v765, 0.0
    %v777 = vsel %vm776, 1.0, %v774
    %v778 = vrcp.pop %v775
    %v779 = vmul.f32 %v777, %v778
    %v780 = vmul.f32 %v779, %v770
    %vm781 = vcmask 3072
    %v782 = vsel %vm781, %v780, 0.0
    %783 = vadd.xlane.f32.xlu0 %v782
    %v784 = vpop.xlane.xlu0 %783
    %v785 = vrot.slane %v784, 4
    %v786 = vadd.f32 %v784, %v785
    %v787 = vrot.slane %v786, 2
    %v788 = vadd.f32 %v786, %v787
    %v789 = vrot.slane %v788, 1
    %v790 = vadd.f32 %v788, %v789
    %s791 = vtos %v790
    %s792 = smul.f32 %s791, 0.5
    %v793 = vsub.f32 1.0, %v770
    %v794 = vmul.f32 %v779, %v793
    %v795 = vsel %vm781, %v794, 0.0
    %796 = vadd.xlane.f32.xlu0 %v795
    %v797 = vpop.xlane.xlu0 %796
    %v798 = vrot.slane %v797, 4
    %v799 = vadd.f32 %v797, %v798
    %v800 = vrot.slane %v799, 2
    %v801 = vadd.f32 %v799, %v800
    %v802 = vrot.slane %v801, 1
    %v803 = vadd.f32 %v801, %v802
    %s804 = vtos %v803
    %s805 = smul.f32 %s804, 0.5
    %v806 = vmax.f32 %v765, 0.0
    %v807 = vmul.f32 %v765, %v770
    %v808 = vsub.f32 %v806, %v807
    %v809 = vadd.f32 %v774, 1.0
    %v810 = vlog2.pop %v809
    %v811 = vmul.f32 %v810, 0.6931472
    %v812 = vmul.f32 -0.5, %v774
    %v813 = vadd.f32 %v812, 1.0
    %v814 = vmul.f32 %v813, %v774
    %v815 = vand.u32 2147483647, %v774
    %vm816 = vcmp.lt.f32.partialorder %v815, 0.0004427343
    %v817 = vsel %vm816, %v814, %v811
    %v818 = vadd.f32 %v808, %v817
    %v819 = vsel %vm781, %v818, 0.0
    %820 = vadd.xlane.f32.xlu0 %v819
    %v821 = vpop.xlane.xlu0 %820
    %v822 = vrot.slane %v821, 4
    %v823 = vadd.f32 %v821, %v822
    %v824 = vrot.slane %v823, 2
    %v825 = vadd.f32 %v823, %v824
    %v826 = vrot.slane %v825, 1
    %v827 = vadd.f32 %v825, %v826
    %s828 = vtos %v827
    %s829 = smul.f32 %s828, 0.5
    %s830 = scalar_lea.smem [#allocation3], 0
    %831 = sst [smem:[%s830]] %s829
    %s832 = scalar_lea.smem [#allocation3], 1
    %833 = sst [smem:[%s832]] %s792
    %s834 = scalar_lea.smem [#allocation3], 2
    %835 = sst [smem:[%s834]] %s805
    %s836 = scalar_lea.smem [#allocation3], 3
    %837 = sst [smem:[%s836]] 0.0
    // Predicated region
    $region22: #{_discriminator_loss_impl.1} parent=1 // pred_check
      _
    $region23: #{_discriminator_loss_impl.1} parent=1 // pred_check_branch
      %839 = sbr.rel (0) target = $region25
    $region24: #{_discriminator_loss_impl.1} parent=1 // pred_region
      %s841 = ssub.s32 16, 16
      %842 = vsyncadd [#allocation4], %s841
      %s844 = sshll.u32 %s5, 4
      %s845 = int_to_ptr.vmem [resolvable:$true] %s844
      %847 = dma.smem_to_vmem [#allocation3], 16, %s845, [#allocation4]
    $region25: #{_discriminator_loss_impl.1} parent=1 // pred_fallthru
      _
    // Predicated region
    $region26: #{_discriminator_loss_impl.1} parent=1 // pred_check
      _
    $region27: #{_discriminator_loss_impl.1} parent=1 // pred_check_branch
      %849 = sbr.rel (0) target = $region29
    $region28: #{_discriminator_loss_impl.1} parent=1 // pred_region
      %850 = dma.done [#allocation4], 16
    $region29: #{_discriminator_loss_impl.1} parent=1 // pred_fallthru
      _
    %851 = sfence
    %852 = vsyncpa [#allocation4], 1

</llo_original>
